<compile_context>
chip_gen: v5e
topology: v5e:2x2
jax: 0.10.0
libtpu: 0.0.40
codegen_flags: <defaults>
</compile_context>

<pallas_src>
import math

import jax
import jax.numpy as jnp
from jax.experimental import pallas as pl
from jax.experimental.pallas import tpu as pltpu

# The whole problem is one VMEM tile: full-block specs, no grid, no index_map.
_VMEM = pl.BlockSpec(memory_space=pltpu.MemorySpace.VMEM)


def _erf(z):
    # Abramowitz & Stegun 7.1.26, |abs err| < 1.5e-7 (~f32 ulp).  Matches torch
    # nn.GELU()'s exact erf semantics without relying on lax.erf lowering;
    # only VPU mul/add plus EUP exp/recip (the divide goes to the EUP slot).
    a1, a2, a3, a4, a5 = (0.254829592, -0.284496736, 1.421413741,
                          -1.453152027, 1.061405429)
    p = 0.3275911
    s = jnp.where(z >= 0.0, 1.0, -1.0)
    az = jnp.abs(z)
    t = pl.reciprocal(1.0 + p * az, approx=True)
    poly = ((((a5 * t + a4) * t + a3) * t + a2) * t + a1) * t
    return s * (1.0 - poly * jnp.exp(-az * az))


def _gelu_exact(h):
    return 0.5 * h * (1.0 + _erf(h * (1.0 / math.sqrt(2.0))))


# ---------------------------------------------------------------------------
# Fused: RandomOrLearnedSinusoidalPosEmb + Linear + GELU + Linear (time_mlp)
# ---------------------------------------------------------------------------
def _time_mlp_kernel(x_ref, fp_ref, rows_ref, w1sc_ref, w2t_ref, out_ref):
    # x_ref:   (B, 1)            timesteps
    # fp_ref:  (2, 2*half)       row 0 = 2*pi*[w, w], row 1 = [0, pi/2] phases
    # rows_ref:(3, time_dim)     row 0 = w1 x-column, row 1 = b1, row 2 = b2
    # w1sc_ref:(2*half, time_dim) stacked [sin-rows ; cos-rows] of W1^T
    # w2t_ref: (time_dim, time_dim) W2^T
    x = x_ref[...]                                      # (B, 1)
    z = x * fp_ref[0:1, :] + fp_ref[1:2, :]             # (B, 2*half)
    s = jnp.sin(z)                                      # == [sin(f) | cos(f)]
    h = x * rows_ref[0:1, :]                            # raw-x column of Linear1
    h = h + jnp.dot(s, w1sc_ref[...], preferred_element_type=jnp.float32)
    h = h + rows_ref[1:2, :]                            # + b1
    h = _gelu_exact(h)                                  # exact-erf GELU
    out_ref[...] = (jnp.dot(h, w2t_ref[...], preferred_element_type=jnp.float32)
                    + rows_ref[2:3, :])                 # + b2


def fold_time_mlp_params(pos_weights, w1, b1, w2, b2):
    """One-time parameter folding (NOT on the per-step path).

    pos_weights: (half,)               RandomOrLearnedSinusoidalPosEmb.weights
    w1: (time_dim, 2*half+1), b1: (time_dim,)   [torch Linear layout]
    w2: (time_dim, time_dim),  b2: (time_dim,)
    """
    half = pos_weights.shape[0]
    time_dim = w1.shape[0]
    assert w1.shape == (time_dim, 2 * half + 1)
    w1t = w1.T.astype(jnp.float32)                       # (2*half+1, time_dim)
    w1x = w1t[0:1, :]                                    # x-column row
    w1sc = w1t[1:, :]                                    # [sin rows ; cos rows]
    freq_w = jnp.tile(pos_weights.astype(jnp.float32) * (2.0 * math.pi), (2,))
    phase = jnp.concatenate([jnp.zeros((half,), jnp.float32),
                             jnp.full((half,), 0.5 * math.pi, jnp.float32)])
    fp = jnp.stack([freq_w, phase], axis=0)              # (2, 2*half)
    rows = jnp.concatenate([w1x,
                            b1.reshape(1, time_dim).astype(jnp.float32),
                            b2.reshape(1, time_dim).astype(jnp.float32)],
                           axis=0)                       # (3, time_dim)
    w2t = w2.T.astype(jnp.float32)                       # (time_dim, time_dim)
    return fp, rows, w1sc, w2t


def time_mlp(x, folded_params):
    """Fused Unet.time_mlp forward.  x: (B,) timesteps -> (B, time_dim)."""
    fp, rows, w1sc, w2t = folded_params
    b = x.shape[0]
    time_dim = rows.shape[1]
    x2 = x.reshape(b, 1).astype(jnp.float32)
    return pl.pallas_call(
        _time_mlp_kernel,
        out_shape=jax.ShapeDtypeStruct((b, time_dim), jnp.float32),
        in_specs=[_VMEM] * 5,
        out_specs=_VMEM,
    )(x2, fp, rows, w1sc, w2t)


# ---------------------------------------------------------------------------
# Pure-JAX references (match PyTorch module semantics exactly)
# ---------------------------------------------------------------------------
def _pos_emb_ref(x, weights):
    freqs = x[:, None] * weights[None, :] * 2.0 * math.pi
    return jnp.concatenate([x[:, None], jnp.sin(freqs), jnp.cos(freqs)], axis=-1)


def _time_mlp_ref(x, weights, w1, b1, w2, b2):
    hi = jax.lax.Precision.HIGHEST
    emb = _pos_emb_ref(x, weights)
    h = jnp.dot(emb, w1.T, precision=hi) + b1
    h = jax.nn.gelu(h, approximate=False)                # torch nn.GELU() default
    return jnp.dot(h, w2.T, precision=hi) + b2


if __name__ == "__main__":
    # Unet defaults: learned_sinusoidal_dim=16 -> half=8, fourier_dim=17;
    # dim=32 -> time_dim = 4*dim = 128.  Batch = 8 keeps the (B, 128) output
    # tile sublane-full (unmasked stores).
    dim = 32
    learned_sinusoidal_dim = 16
    half = learned_sinusoidal_dim // 2
    fourier_dim = learned_sinusoidal_dim + 1
    time_dim = dim * 4
    batch = 8

    key = jax.random.PRNGKey(0)
    kw, kx, k1, k2, k3, k4 = jax.random.split(key, 6)
    pos_weights = jax.random.normal(kw, (half,), dtype=jnp.float32)
    t = jax.random.uniform(kx, (batch,), dtype=jnp.float32) * 1000.0
    w1 = jax.random.normal(k1, (time_dim, fourier_dim), dtype=jnp.float32) * 0.1
    b1 = jax.random.normal(k2, (time_dim,), dtype=jnp.float32) * 0.1
    w2 = jax.random.normal(k3, (time_dim, time_dim), dtype=jnp.float32) * 0.1
    b2 = jax.random.normal(k4, (time_dim,), dtype=jnp.float32) * 0.1

    # One-time fold (in a real model this happens at init, not per step).
    folded = jax.tree_util.tree_map(jax.block_until_ready,
                                    fold_time_mlp_params(pos_weights, w1, b1, w2, b2))

    out = jax.block_until_ready(time_mlp(t, folded))
    ref = _time_mlp_ref(t, pos_weights, w1, b1, w2, b2)

    assert out.shape == (batch, time_dim), out.shape
    err = float(jnp.max(jnp.abs(out - ref)))
    scale = float(jnp.max(jnp.abs(ref))) + 1.0
    assert err / scale < 2e-3, (err, scale)

    # TODO(synk): the remaining Unet (init/final convs, ResNet blocks, attention,
    # up/downsampling) is not covered here; the per-ResNet-block SiLU+Linear
    # consumer of this (B, time_dim) embedding is the natural next fusion target.
    # TODO(synk): forward-only — no custom_vjp; training should fall back to
    # the pure-JAX _time_mlp_ref path.
    print("KERNEL_OK")
</pallas_src>

<mosaic_0001>
module attributes {stable_mosaic.version = 11 : i64} {
  func.func @_time_mlp_kernel(%arg0: memref<8x1xf32, #tpu.memory_space<vmem>>, %arg1: memref<2x16xf32, #tpu.memory_space<vmem>>, %arg2: memref<3x128xf32, #tpu.memory_space<vmem>>, %arg3: memref<16x128xf32, #tpu.memory_space<vmem>>, %arg4: memref<128x128xf32, #tpu.memory_space<vmem>>, %arg5: memref<8x128xf32, #tpu.memory_space<vmem>>) attributes {dimension_semantics = [], scalar_prefetch = 0 : i64, scratch_operands = 0 : i64, tpu.core_type = #tpu.core_type<tc>} {
    %c0 = arith.constant 0 : index
    %c0_0 = arith.constant 0 : index
    %0 = vector.load %arg0[%c0, %c0_0] : memref<8x1xf32, #tpu.memory_space<vmem>>, vector<8x1xf32>
    %c0_1 = arith.constant 0 : index
    %c0_2 = arith.constant 0 : index
    %1 = vector.load %arg1[%c0_1, %c0_2] : memref<2x16xf32, #tpu.memory_space<vmem>>, vector<1x16xf32>
    %2 = vector.broadcast %0 : vector<8x1xf32> to vector<8x16xf32>
    %3 = vector.broadcast %1 : vector<1x16xf32> to vector<8x16xf32>
    %4 = arith.mulf %2, %3 : vector<8x16xf32>
    %c1 = arith.constant 1 : index
    %c0_3 = arith.constant 0 : index
    %5 = vector.load %arg1[%c1, %c0_3] : memref<2x16xf32, #tpu.memory_space<vmem>>, vector<1x16xf32>
    %6 = vector.broadcast %5 : vector<1x16xf32> to vector<8x16xf32>
    %7 = arith.addf %4, %6 : vector<8x16xf32>
    %8 = math.sin %7 : vector<8x16xf32>
    %c0_4 = arith.constant 0 : index
    %c0_5 = arith.constant 0 : index
    %9 = vector.load %arg2[%c0_4, %c0_5] : memref<3x128xf32, #tpu.memory_space<vmem>>, vector<1x128xf32>
    %10 = vector.broadcast %0 : vector<8x1xf32> to vector<8x128xf32>
    %11 = vector.broadcast %9 : vector<1x128xf32> to vector<8x128xf32>
    %12 = arith.mulf %10, %11 : vector<8x128xf32>
    %c0_6 = arith.constant 0 : index
    %c0_7 = arith.constant 0 : index
    %13 = vector.load %arg3[%c0_6, %c0_7] : memref<16x128xf32, #tpu.memory_space<vmem>>, vector<16x128xf32>
    %cst = arith.constant dense<0.000000e+00> : vector<8x128xf32>
    %14 = tpu.matmul %8, %13, %cst {dimension_numbers = #tpu.dot_dimension_numbers<[1], [0], [0], [1], [0, 0, 1, 1], [], []>} : vector<8x16xf32>, vector<16x128xf32>, vector<8x128xf32> -> vector<8x128xf32>
    %15 = arith.addf %12, %14 : vector<8x128xf32>
    %c1_8 = arith.constant 1 : index
    %c0_9 = arith.constant 0 : index
    %16 = vector.load %arg2[%c1_8, %c0_9] : memref<3x128xf32, #tpu.memory_space<vmem>>, vector<1x128xf32>
    %17 = vector.broadcast %16 : vector<1x128xf32> to vector<8x128xf32>
    %18 = arith.addf %15, %17 : vector<8x128xf32>
    %cst_10 = arith.constant 5.000000e-01 : f32
    %19 = vector.broadcast %cst_10 : f32 to vector<8x128xf32>
    %20 = arith.mulf %19, %18 : vector<8x128xf32>
    %cst_11 = arith.constant 0.707106769 : f32
    %21 = vector.broadcast %cst_11 : f32 to vector<8x128xf32>
    %22 = arith.mulf %18, %21 : vector<8x128xf32>
    %cst_12 = arith.constant 0.000000e+00 : f32
    %23 = vector.broadcast %cst_12 : f32 to vector<8x128xf32>
    %24 = arith.cmpf oge, %22, %23 : vector<8x128xf32>
    %cst_13 = arith.constant 1.000000e+00 : f32
    %cst_14 = arith.constant -1.000000e+00 : f32
    %25 = vector.broadcast %cst_13 : f32 to vector<8x128xf32>
    %26 = vector.broadcast %cst_14 : f32 to vector<8x128xf32>
    %27 = arith.select %24, %25, %26 : vector<8x128xi1>, vector<8x128xf32>
    %28 = math.absf %22 : vector<8x128xf32>
    %cst_15 = arith.constant 0.327591091 : f32
    %29 = vector.broadcast %cst_15 : f32 to vector<8x128xf32>
    %30 = arith.mulf %29, %28 : vector<8x128xf32>
    %cst_16 = arith.constant 1.000000e+00 : f32
    %31 = vector.broadcast %cst_16 : f32 to vector<8x128xf32>
    %32 = arith.addf %31, %30 : vector<8x128xf32>
    %33 = tpu.reciprocal %32 {approx = true} : vector<8x128xf32> -> vector<8x128xf32>
    %cst_17 = arith.constant 1.06140542 : f32
    %34 = vector.broadcast %cst_17 : f32 to vector<8x128xf32>
    %35 = arith.mulf %34, %33 : vector<8x128xf32>
    %cst_18 = arith.constant -1.45315206 : f32
    %36 = vector.broadcast %cst_18 : f32 to vector<8x128xf32>
    %37 = arith.addf %35, %36 : vector<8x128xf32>
    %38 = arith.mulf %37, %33 : vector<8x128xf32>
    %cst_19 = arith.constant 1.42141378 : f32
    %39 = vector.broadcast %cst_19 : f32 to vector<8x128xf32>
    %40 = arith.addf %38, %39 : vector<8x128xf32>
    %41 = arith.mulf %40, %33 : vector<8x128xf32>
    %cst_20 = arith.constant -0.284496725 : f32
    %42 = vector.broadcast %cst_20 : f32 to vector<8x128xf32>
    %43 = arith.addf %41, %42 : vector<8x128xf32>
    %44 = arith.mulf %43, %33 : vector<8x128xf32>
    %cst_21 = arith.constant 0.254829586 : f32
    %45 = vector.broadcast %cst_21 : f32 to vector<8x128xf32>
    %46 = arith.addf %44, %45 : vector<8x128xf32>
    %47 = arith.mulf %46, %33 : vector<8x128xf32>
    %cst_22 = arith.constant 0.000000e+00 : f32
    %48 = vector.broadcast %cst_22 : f32 to vector<8x128xf32>
    %49 = arith.subf %48, %28 : vector<8x128xf32>
    %50 = arith.mulf %49, %28 : vector<8x128xf32>
    %51 = math.exp %50 : vector<8x128xf32>
    %52 = arith.mulf %47, %51 : vector<8x128xf32>
    %cst_23 = arith.constant 1.000000e+00 : f32
    %53 = vector.broadcast %cst_23 : f32 to vector<8x128xf32>
    %54 = arith.subf %53, %52 : vector<8x128xf32>
    %55 = arith.mulf %27, %54 : vector<8x128xf32>
    %cst_24 = arith.constant 1.000000e+00 : f32
    %56 = vector.broadcast %cst_24 : f32 to vector<8x128xf32>
    %57 = arith.addf %56, %55 : vector<8x128xf32>
    %58 = arith.mulf %20, %57 : vector<8x128xf32>
    %c0_25 = arith.constant 0 : index
    %c0_26 = arith.constant 0 : index
    %59 = vector.load %arg4[%c0_25, %c0_26] : memref<128x128xf32, #tpu.memory_space<vmem>>, vector<128x128xf32>
    %cst_27 = arith.constant dense<0.000000e+00> : vector<8x128xf32>
    %60 = tpu.matmul %58, %59, %cst_27 {dimension_numbers = #tpu.dot_dimension_numbers<[1], [0], [0], [1], [0, 0, 1, 1], [], []>} : vector<8x128xf32>, vector<128x128xf32>, vector<8x128xf32> -> vector<8x128xf32>
    %c2 = arith.constant 2 : index
    %c0_28 = arith.constant 0 : index
    %61 = vector.load %arg2[%c2, %c0_28] : memref<3x128xf32, #tpu.memory_space<vmem>>, vector<1x128xf32>
    %62 = vector.broadcast %61 : vector<1x128xf32> to vector<8x128xf32>
    %63 = arith.addf %60, %62 : vector<8x128xf32>
    %c0_29 = arith.constant 0 : index
    %c0_30 = arith.constant 0 : index
    %64 = vector.load %arg5[%c0_29, %c0_30] : memref<8x128xf32, #tpu.memory_space<vmem>>, vector<8x128xf32>
    tpu.vector_store %arg5[%c0_29, %c0_30], %63 {strides = array<i32>} : memref<8x128xf32, #tpu.memory_space<vmem>>, vector<8x128xf32>,
    return
  }
}

</mosaic_0001>

<llo_original>
// kernel: tpu_custom_call.1
$region0: #{tpu_custom_call.1}
  #allocation0 [shape = 'u32[]', space=smem, size = 0x4, offset = 0x4, fixed_abs, tag = 'smem constant byte address 0x4 - core index']
  #allocation1 [shape = 'u32[72,128]{1,0:T(1,128)}', space=vmem, size = 0x9000, scoped, tag = 'internal scratch']
  %s0 = inlined_call_operand.vmem [shape: f32[8,1], index: 0, kind: input, shape index: {}]
  %s1 = inlined_call_operand.vmem [shape: f32[2,16], index: 1, kind: input, shape index: {}]
  %s2 = inlined_call_operand.vmem [shape: f32[3,128], index: 2, kind: input, shape index: {}]
  %s3 = inlined_call_operand.hbm [shape: f32[16,128], index: 3, kind: input, shape index: {}]
  %s4 = inlined_call_operand.hbm [shape: f32[128,128], index: 4, kind: input, shape index: {}]
  %s5 = inlined_call_operand.hbm [shape: f32[8,128], index: 5, kind: output, shape index: {}]
  %s6 = sld [smem:[#allocation0]]
  $region38: #{tpu_custom_call.1} parent=0
    _
  %s8 = ssub.s32 1, %s6
  %s9 = scalar_select 0, %s8, %s6
  $region1: #{tpu_custom_call.1} parent=0
    #allocation2 [shape = 'u8[8192]{0}', space=vmem, size = 0x2000, scoped, tag = 'input window, operand 3, single buffered']
    #allocation3 [shape = 's32[1]{0}', space=sflag, size = 0x4, scoped, tag = 'scoped memory for tpu_custom_call.1']
    #allocation4 [shape = 's32[1]{0}', space=sflag, size = 0x4, scoped, tag = 'scoped memory for tpu_custom_call.1']
    #allocation5 [shape = 'u8[65536]{0}', space=vmem, size = 0x10000, scoped, tag = 'input window, operand 4, single buffered']
    #allocation6 [shape = 's32[1]{0}', space=sflag, size = 0x4, scoped, tag = 'scoped memory for tpu_custom_call.1']
    #allocation7 [shape = 'u8[4096]{0}', space=vmem, size = 0x1000, scoped, tag = 'output window, operand 0, single buffered']
    %10 = vsyncpa [#allocation3], 0
    %11 = vsyncpa [#allocation6], 0
    %12 = vsyncpa [#allocation4], 0
    // Predicated region
    $region2: #{tpu_custom_call.1} parent=1 // pred_check
      _
    $region3: #{tpu_custom_call.1} parent=1 // pred_check_branch
      %14 = sbr.rel (0) target = $region5
    $region4: #{tpu_custom_call.1} parent=1 // pred_region
      _
    $region5: #{tpu_custom_call.1} parent=1 // pred_fallthru
      _
    // Predicated region
    $region6: #{tpu_custom_call.1} parent=1 // pred_check
      _
    $region7: #{tpu_custom_call.1} parent=1 // pred_check_branch
      %16 = sbr.rel (0) target = $region9
    $region8: #{tpu_custom_call.1} parent=1 // pred_region
      _
    $region9: #{tpu_custom_call.1} parent=1 // pred_fallthru
      _
    // Predicated region
    $region10: #{tpu_custom_call.1} parent=1 // pred_check
      _
    $region11: #{tpu_custom_call.1} parent=1 // pred_check_branch
      %18 = sbr.rel (0) target = $region13
    $region12: #{tpu_custom_call.1} parent=1 // pred_region
      _
    $region13: #{tpu_custom_call.1} parent=1 // pred_fallthru
      _
    // Predicated region
    $region14: #{tpu_custom_call.1} parent=1 // pred_check
      _
    $region15: #{tpu_custom_call.1} parent=1 // pred_check_branch
      %20 = sbr.rel (0) target = $region17
    $region16: #{tpu_custom_call.1} parent=1 // pred_region
      %22 = vsyncadd [#allocation3], 0
      %s23 = sshll.u32 %s3, 4
      %s24 = int_to_ptr.hbm [resolvable:$true] %s23
      %s25 = sshll.u32 [#allocation2], 4
      %s26 = int_to_ptr.vmem [resolvable:$true] %s25
      %31 = dma.hbm_to_vmem [thread:$0]  %s24, 256, %s26, [#allocation3], 128, 128, 8
    $region17: #{tpu_custom_call.1} parent=1 // pred_fallthru
      _
    // Predicated region
    $region18: #{tpu_custom_call.1} parent=1 // pred_check
      _
    $region19: #{tpu_custom_call.1} parent=1 // pred_check_branch
      %33 = sbr.rel (0) target = $region21
    $region20: #{tpu_custom_call.1} parent=1 // pred_region
      %35 = vsyncadd [#allocation6], 0
      %s36 = sshll.u32 %s4, 4
      %s37 = int_to_ptr.hbm [resolvable:$true] %s36
      %s38 = sshll.u32 [#allocation5], 4
      %s39 = int_to_ptr.vmem [resolvable:$true] %s38
      %44 = dma.hbm_to_vmem [thread:$0]  %s37, 2048, %s39, [#allocation6], 128, 128, 8
    $region21: #{tpu_custom_call.1} parent=1 // pred_fallthru
      _
    // Predicated region
    $region22: #{tpu_custom_call.1} parent=1 // pred_check
      _
    $region23: #{tpu_custom_call.1} parent=1 // pred_check_branch
      %46 = sbr.rel (0) target = $region25
    $region24: #{tpu_custom_call.1} parent=1 // pred_region
      %48 = dma.done [#allocation3], 256
    $region25: #{tpu_custom_call.1} parent=1 // pred_fallthru
      _
    // Predicated region
    $region26: #{tpu_custom_call.1} parent=1 // pred_check
      _
    $region27: #{tpu_custom_call.1} parent=1 // pred_check_branch
      %50 = sbr.rel (0) target = $region29
    $region28: #{tpu_custom_call.1} parent=1 // pred_region
      %52 = dma.done [#allocation6], 2048
    $region29: #{tpu_custom_call.1} parent=1 // pred_fallthru
      _
    %v53 = vld [vmem:[%s0] sm:$0xff]
    %v54 = vld [vmem:[%s1] sm:$0x1]
    %56 = vset.pattern.permute.xlu0 0
    %57 = vperm.xlu0 %56, %v53
    %v58 = vpop.permute.xlu0 %57
    %v60 = vperm.slane %v54, 0
    %v61 = vmul.f32 %v58, %v60
    %v62 = vld [vmem:[%s1 + $0x1] sm:$0x1]
    %v63 = vperm.slane %v62, 0
    %v64 = vadd.f32 %v61, %v63
    %v65 = vand.u32 2147483647, %v64
    %vm66 = vcmp.le.f32.partialorder %v65, 0.7853982
    %vm67 = vcmp.lt.s32.totalorder %v64, 0
    %v68 = vand.u32 %v64, 2139095040
    %v69 = vshrl.u32 %v68, 23
    %v70 = vsub.s32 %v69, 127
    %v71 = vand.u32 2147483647, %v64
    %v72 = vand.u32 %v71, 8388607
    %v73 = vor.u32 %v72, 8388608
    %v74 = vsub.s32 0, %v73
    %v75 = vadd.s32 %v70, 1
    %vm76 = vcmp.gt.s32.totalorder %v75, 0
    %v77 = vsel %vm76, %v75, 0
    %v78 = vshrl.u32 %v77, 5
    %v79 = vand.u32 %v77, 31
    %v80 = vsub.s32 32, %v79
    %v81 = vshrl.u32 683565275, %v80
    %v82 = vshll.u32 683565275, %v79
    %v83 = vshrl.u32 2475754826, %v80
    %v84 = vor.u32 %v82, %v83
    %v85 = vshll.u32 2475754826, %v79
    %v86 = vshrl.u32 2131351028, %v80
    %v87 = vor.u32 %v85, %v86
    %v88 = vshll.u32 2131351028, %v79
    %v89 = vshrl.u32 2102212464, %v80
    %v90 = vor.u32 %v88, %v89
    %v91 = vshll.u32 2102212464, %v79
    %v92 = vshrl.u32 920167782, %v80
    %v93 = vor.u32 %v91, %v92
    %v94 = vshll.u32 920167782, %v79
    %v95 = vshrl.u32 1326507024, %v80
    %v96 = vor.u32 %v94, %v95
    %vm97 = vcmp.lt.s32.totalorder %v78, 1
    %vm98 = vcmp.lt.s32.totalorder %v78, 2
    %vm99 = vcmp.lt.s32.totalorder %v78, 3
    %vm100 = vcmp.lt.s32.totalorder %v78, 4
    %v101 = vsel %vm97, %v81, %v84
    %v102 = vsel %vm100, %v90, 2102212464
    %v103 = vsel %vm99, %v87, %v102
    %v104 = vsel %vm98, %v101, %v103
    %v105 = vsel %vm97, %v84, %v87
    %v106 = vsel %vm100, %v93, 920167782
    %v107 = vsel %vm99, %v90, %v106
    %v108 = vsel %vm98, %v105, %v107
    %v109 = vsel %vm97, %v87, %v90
    %v110 = vsel %vm100, %v96, 1326507024
    %v111 = vsel %vm99, %v93, %v110
    %v112 = vsel %vm98, %v109, %v111
    %v113 = vshll.u32 %v73, 8
    %v114 = vand.u32 %v113, 65535
    %v115 = vshrl.u32 %v113, 16
    %v116 = vand.u32 %v112, 65535
    %v117 = vshrl.u32 %v112, 16
    %v118 = vmul.u32 %v114, %v116
    %v119 = vmul.u32 %v114, %v117
    %v120 = vmul.u32 %v115, %v116
    %v121 = vmul.u32 %v115, %v117
    %v122 = vshll.u32 %v119, 16
    %v123 = vshrl.u32 %v119, 16
    %v124 = vshll.u32 %v120, 16
    %v125 = vshrl.u32 %v120, 16
    %vm126 = vc.u32 %v118, %v122
    %v127 = vsel %vm126, 1, 0
    %v128 = vadd.s32 %v118, %v122
    %v129 = vadd.s32 %v121, %v127
    %vm130 = vc.u32 %v128, %v124
    %v131 = vsel %vm130, 1, 0
    %v132 = vadd.s32 %v128, %v124
    %v133 = vadd.s32 %v129, %v131
    %v134 = vadd.s32 %v133, %v123
    %v135 = vadd.s32 %v134, %v125
    %v136 = vand.u32 %v113, 65535
    %v137 = vshrl.u32 %v113, 16
    %v138 = vand.u32 %v108, 65535
    %v139 = vshrl.u32 %v108, 16
    %v140 = vmul.u32 %v136, %v138
    %v141 = vmul.u32 %v136, %v139
    %v142 = vmul.u32 %v137, %v138
    %v143 = vmul.u32 %v137, %v139
    %v144 = vshll.u32 %v141, 16
    %v145 = vshrl.u32 %v141, 16
    %v146 = vshll.u32 %v142, 16
    %v147 = vshrl.u32 %v142, 16
    %vm148 = vc.u32 %v140, %v144
    %v149 = vsel %vm148, 1, 0
    %v150 = vadd.s32 %v140, %v144
    %v151 = vadd.s32 %v143, %v149
    %vm152 = vc.u32 %v150, %v146
    %v153 = vsel %vm152, 1, 0
    %v154 = vadd.s32 %v150, %v146
    %v155 = vadd.s32 %v151, %v153
    %v156 = vadd.s32 %v155, %v145
    %v157 = vadd.s32 %v156, %v147
    %v158 = vmul.u32 %v113, %v104
    %v159 = vadd.s32 %v135, %v154
    %vm160 = vc.u32 %v135, %v154
    %v161 = vadd.s32 %v157, 1
    %v162 = vsel %vm160, %v161, %v157
    %v163 = vadd.s32 %v158, %v162
    %v164 = vadd.s32 %v163, 536870912
    %v165 = vshrl.u32 %v164, 30
    %v166 = vshll.u32 %v165, 30
    %v167 = vsub.s32 %v163, %v166
    %vm168 = vcmp.lt.s32.totalorder %v167, 0
    %v169 = vsub.s32 0, %v167
    %v170 = vsel %vm168, %v169, %v167
    %v171 = vclz %v170
    %v172 = vsub.s32 %v171, 2
    %vm173 = vcmp.gt.s32.totalorder 0, %v172
    %v174 = vsel %vm173, 0, %v172
    %v175 = vsub.s32 32, %v174
    %v176 = vshll.u32 %v167, %v174
    %v177 = vshrl.u32 %v159, %v175
    %v178 = vor.u32 %v176, %v177
    %v179 = vsub.s32 4294967266, %v174
    %v180 = vadd.s32 %v179, 127
    %v181 = vshll.u32 %v180, 23
    %v182 = vor.u32 4788187, %v181
    %v183 = vand.u32 2147483647, %v182
    %v185 = vcvt.s32.f32 %v178
    %v186 = vmul.f32 %v185, %v183
    %v187 = vxor.u32 %v186, 2147483648
    %v188 = vsel %vm67, %v187, %v186
    %v189 = vsub.s32 4, %v165
    %v190 = vsel %vm67, %v189, %v165
    %v191 = vsel %vm66, %v64, %v188
    %v192 = vsel %vm66, 0, %v190
    %v193 = vmul.f32 %v191, %v191
    %v194 = vmul.f32 %v193, -0.001358992
    %v195 = vadd.f32 %v194, 0.041655596
    %v196 = vmul.f32 %v193, %v195
    %v197 = vadd.f32 %v196, -0.4999988
    %v198 = vmul.f32 %v193, %v197
    %v199 = vadd.f32 1.0, %v198
    %v200 = vmul.f32 %v191, %v191
    %v201 = vmul.f32 %v200, -0.00019511016
    %v202 = vadd.f32 %v201, 0.008332121
    %v203 = vmul.f32 %v200, %v202
    %v204 = vadd.f32 %v203, -0.16666654
    %v205 = vmul.f32 %v200, %v204
    %v206 = vadd.f32 %v205, 1.0
    %v207 = vmul.f32 %v206, %v191
    %vm208 = vweird.f32 %v64
    %v209 = vadd.s32 %v192, 3
    %v210 = vand.u32 %v209, 3
    %vm211 = vcmp.lt.s32.totalorder %v210, 2
    %vm212 = vcmp.eq.s32.totalorder %v210, 0
    %v213 = vxor.u32 %v207, 2147483648
    %v214 = vsel %vm212, %v199, %v213
    %vm215 = vcmp.eq.s32.totalorder %v210, 2
    %v216 = vxor.u32 %v199, 2147483648
    %v217 = vsel %vm215, %v216, %v207
    %v218 = vsel %vm211, %v214, %v217
    %v219 = vsel %vm208, nan, %v218
    %v220 = vld [vmem:[%s2] sm:$0x1]
    %v221 = vperm.slane %v220, 0
    %v222 = vmul.f32 %v58, %v221
    %v223 = vld [vmem:[#allocation2] sm:$0xff]
    %v224 = vld [vmem:[#allocation2 + $0x8] sm:$0xff]
    %vm225 = vcmask 130048
    %v227 = vsel %vm225, %v219, 0
    %229 = vmatpush.msra.mxu0 0.0
    %230 = vmatpush.msra.mxu0 0.0
    %231 = vmatpush.msra.mxu0 0.0
    %232 = vmatpush.msra.mxu0 0.0
    %233 = vmatpush.msra.mxu0 0.0
    %234 = vmatpush.msra.mxu0 0.0
    %235 = vmatpush.msra.mxu0 0.0
    %236 = vmatpush.msra.mxu0 0.0
    %237 = vmatpush.msra.mxu0 0.0
    %238 = vmatpush.msra.mxu0 0.0
    %239 = vmatpush.msra.mxu0 0.0
    %240 = vmatpush.msra.mxu0 0.0
    %241 = vmatpush.msra.mxu0 0.0
    %242 = vmatpush.msra.mxu0 0.0
    %243 = vmatpush.msra.mxu0 %v224
    %244 = vmatpush.msra.mxu0 %v223
    %245 = vmatmul.f32.gmra.mxu0 %v227
    %v246 = vpop.f32.mrf.mxu0
    %v247 = vadd.f32 0.0, %v246
    %248 = vdwg.mxu0
    %v249 = vadd.f32 %v222, %v247
    %v250 = vld [vmem:[%s2 + $0x1] sm:$0x1]
    %v251 = vperm.slane %v250, 0
    %v252 = vadd.f32 %v249, %v251
    %v253 = vmul.f32 %v252, 0.5
    %v254 = vmul.f32 %v252, 0.70710677
    %vm255 = vcmp.ge.f32.partialorder %v254, 0.0
    %v256 = vsel %vm255, 1.0, -1.0
    %v257 = vand.u32 2147483647, %v254
    %v258 = vmul.f32 %v257, 0.3275911
    %v259 = vadd.f32 %v258, 1.0
    %v260 = vrcp.pop %v259
    %v261 = vmul.f32 %v260, 1.0614054
    %v262 = vadd.f32 %v261, -1.4531521
    %v263 = vmul.f32 %v262, %v260
    %v264 = vadd.f32 %v263, 1.4214138
    %v265 = vmul.f32 %v264, %v260
    %v266 = vadd.f32 %v265, -0.28449672
    %v267 = vmul.f32 %v266, %v260
    %v268 = vadd.f32 %v267, 0.2548296
    %v269 = vmul.f32 %v268, %v260
    %v270 = vsub.f32 0.0, %v257
    %v271 = vmul.f32 %v270, %v257
    %v272 = vmul.f32 %v271, 1.442695
    %v273 = vpow.pop %v272
    %v274 = vmul.f32 %v269, %v273
    %v275 = vsub.f32 1.0, %v274
    %v276 = vmul.f32 %v256, %v275
    %v277 = vadd.f32 %v276, 1.0
    %v278 = vmul.f32 %v253, %v277
    %v279 = vld [vmem:[#allocation5] sm:$0xff]
    %v280 = vld [vmem:[#allocation5 + $0x8] sm:$0xff]
    %v281 = vld [vmem:[#allocation5 + $0x10] sm:$0xff]
    %v282 = vld [vmem:[#allocation5 + $0x18] sm:$0xff]
    %v283 = vld [vmem:[#allocation5 + $0x20] sm:$0xff]
    %v284 = vld [vmem:[#allocation5 + $0x28] sm:$0xff]
    %v285 = vld [vmem:[#allocation5 + $0x30] sm:$0xff]
    %v286 = vld [vmem:[#allocation5 + $0x38] sm:$0xff]
    %v287 = vld [vmem:[#allocation5 + $0x40] sm:$0xff]
    %v288 = vld [vmem:[#allocation5 + $0x48] sm:$0xff]
    %v289 = vld [vmem:[#allocation5 + $0x50] sm:$0xff]
    %v290 = vld [vmem:[#allocation5 + $0x58] sm:$0xff]
    %v291 = vld [vmem:[#allocation5 + $0x60] sm:$0xff]
    %v292 = vld [vmem:[#allocation5 + $0x68] sm:$0xff]
    %v293 = vld [vmem:[#allocation5 + $0x70] sm:$0xff]
    %v294 = vld [vmem:[#allocation5 + $0x78] sm:$0xff]
    %v295 = vld [vmem:[%s2 + $0x2] sm:$0x1]
    %v296 = vperm.slane %v295, 0
    %297 = vmatpush.msra.mxu0 %v294
    %298 = vmatpush.msra.mxu0 %v293
    %299 = vmatpush.msra.mxu0 %v292
    %300 = vmatpush.msra.mxu0 %v291
    %301 = vmatpush.msra.mxu0 %v290
    %302 = vmatpush.msra.mxu0 %v289
    %303 = vmatpush.msra.mxu0 %v288
    %304 = vmatpush.msra.mxu0 %v287
    %305 = vmatpush.msra.mxu0 %v286
    %306 = vmatpush.msra.mxu0 %v285
    %307 = vmatpush.msra.mxu0 %v284
    %308 = vmatpush.msra.mxu0 %v283
    %309 = vmatpush.msra.mxu0 %v282
    %310 = vmatpush.msra.mxu0 %v281
    %311 = vmatpush.msra.mxu0 %v280
    %312 = vmatpush.msra.mxu0 %v279
    %313 = vmatmul.f32.gmra.mxu0 %v278
    %v314 = vpop.f32.mrf.mxu0
    %v315 = vadd.f32 %v296, %v314
    %316 = vdwg.mxu0
    %317 = vst [vmem:[#allocation7] sm:$0xff] %v315
    // Predicated region
    $region30: #{tpu_custom_call.1} parent=1 // pred_check
      _
    $region31: #{tpu_custom_call.1} parent=1 // pred_check_branch
      %319 = sbr.rel (0) target = $region33
    $region32: #{tpu_custom_call.1} parent=1 // pred_region
      %321 = vsyncadd [#allocation4], 0
      %s323 = sshll.u32 [#allocation7], 4
      %s324 = int_to_ptr.vmem [resolvable:$true] %s323
      %s325 = sshll.u32 %s5, 4
      %s326 = int_to_ptr.hbm [resolvable:$true] %s325
      %328 = dma.vmem_to_hbm [thread:$0]  %s324, 128, %s326, [#allocation4]
    $region33: #{tpu_custom_call.1} parent=1 // pred_fallthru
      _
    // Predicated region
    $region34: #{tpu_custom_call.1} parent=1 // pred_check
      _
    $region35: #{tpu_custom_call.1} parent=1 // pred_check_branch
      %330 = sbr.rel (0) target = $region37
    $region36: #{tpu_custom_call.1} parent=1 // pred_region
      %332 = dma.done [#allocation4], 128
    $region37: #{tpu_custom_call.1} parent=1 // pred_fallthru
      _
    %333 = vsyncpa [#allocation3], 1
    %334 = vsyncpa [#allocation6], 1
    %335 = vsyncpa [#allocation4], 1

</llo_original>
